<compile_context>
chip_gen: v7x
topology: tpu7x:2x2x1
jax: 0.10.0
libtpu: 0.0.40
codegen_flags: <defaults>
</compile_context>

<pallas_src>
import functools

import jax
import jax.numpy as jnp
from jax.experimental import pallas as pl

EPS = 1e-5
LANE = 128       # TPU lane width; every feature dim is padded to this.
N_VEC_ROWS = 8   # packed-vector slab rows (7 used + 1 pad) = one f32 vreg

# vec-slab row layout
_G1, _BE1, _G2, _BE2, _G3, _BE3, _B4 = range(7)


def _round_up(n, m):
    return ((n + m - 1) // m) * m


def _make_kernel(bf16_matmul: bool):
    """Fused 4-layer MLP kernel. Weights arrive pre-cast if bf16_matmul."""

    def mm(a, w):
        if bf16_matmul:
            a = a.astype(jnp.bfloat16)   # weights already bf16 (pre-cast at prep)
        return jnp.dot(a, w, preferred_element_type=jnp.float32)

    def kernel(x_ref, w_ref, vec_ref, o_ref):
        inv_n = 1.0 / x_ref.shape[0]     # static batch size

        def vrow(i):
            # (1, F) static, tile-aligned slice of the resident vec slab.
            return vec_ref[i:i + 1, :]

        def bn_relu(h, gi, bi):
            # Single-pass batch stats: two INDEPENDENT cross-sublane reductions,
            # then one fused scale/shift (shortens the serial per-layer chain).
            mu = jnp.sum(h, axis=0, keepdims=True) * inv_n
            ex2 = jnp.sum(h * h, axis=0, keepdims=True) * inv_n
            var = jnp.maximum(ex2 - mu * mu, 0.0)     # guard fp cancellation
            inv_std = jax.lax.rsqrt(var + EPS)        # EUP
            scale = inv_std * vrow(gi)                # (1, F)
            shift = vrow(bi) - mu * scale             # (1, F)
            return jnp.maximum(h * scale + shift, 0.0)

        # Pre-BN biases b1..b3 omitted: exactly cancelled by BN mean subtraction.
        h = bn_relu(mm(x_ref[...], w_ref[0]), _G1, _BE1)
        h = bn_relu(mm(h, w_ref[1]), _G2, _BE2)
        h = bn_relu(mm(h, w_ref[2]), _G3, _BE3)
        # Final Linear (bias kept) — lane-dense store into padded output.
        o_ref[...] = (mm(h, w_ref[3]) + vrow(_B4)).astype(o_ref.dtype)

    return kernel


def prepare_params(params, *, bf16_matmul=False):
    """One-time packing of parameters into kernel-ready slabs (off hot path).

    Returns dict with:
      "w"      : (4, F, F) weight slab (f32, or bf16 if bf16_matmul)
      "vec"    : (8, F) f32 slab [g1, be1, g2, be2, g3, be3, b4, 0]
      "out_dim": true output width (static python int)
    bf16_matmul halves weight DMA; recommended only for batch >= 16, not v5e.
    """
    in_dim, h1 = params["w1"].shape
    h2 = params["w2"].shape[1]
    h3 = params["w3"].shape[1]
    out_dim = params["w4"].shape[1]
    fmax = max(_round_up(d, LANE) for d in (in_dim, h1, h2, h3, out_dim))

    def pad_w(w):  # zero K-rows never contribute; zero N-cols stay 0 downstream
        return jnp.pad(w, ((0, fmax - w.shape[0]), (0, fmax - w.shape[1])))

    w_slab = jnp.stack([pad_w(params[f"w{i}"]) for i in range(1, 5)])
    if bf16_matmul:
        w_slab = w_slab.astype(jnp.bfloat16)

    def pad_v(v):  # (1, F) -> (fmax,)
        return jnp.pad(v[0], (0, fmax - v.shape[1]))

    vec_rows = [params["g1"], params["be1"], params["g2"], params["be2"],
                params["g3"], params["be3"], params["b4"]]
    vec_slab = jnp.stack(
        [pad_v(r) for r in vec_rows]
        + [jnp.zeros((fmax,), jnp.float32)] * (N_VEC_ROWS - len(vec_rows)))

    return {"w": w_slab, "vec": vec_slab, "out_dim": out_dim}


@functools.partial(jax.jit, static_argnames=("out_dim",))
def ann_batch_3_forward(x, w_slab, vec_slab, *, out_dim):
    """x: (B, input_size) f32; slabs from prepare_params().

    B is the full BatchNorm batch (never tile it) and should be a multiple of
    8 (16 for the bf16 path) to keep the batch-axis reductions sublane-aligned.
    """
    b, in_dim = x.shape
    fmax = w_slab.shape[-1]
    xp = jnp.pad(x, ((0, 0), (0, fmax - in_dim)))   # only per-call device work

    bf16_matmul = w_slab.dtype == jnp.bfloat16
    args = (xp, w_slab, vec_slab)

    # Advisory cost estimate so XLA can schedule/overlap this tiny call.
    flops = 2 * b * 4 * fmax * fmax
    bytes_accessed = (sum(int(a.size) * a.dtype.itemsize for a in args)
                      + b * fmax * 4)
    cost = pl.CostEstimate(flops=flops, transcendentals=3 * fmax,
                           bytes_accessed=bytes_accessed)

    def full_spec(a):
        shape = a.shape  # whole array resident in VMEM, gridless call
        return pl.BlockSpec(shape, lambda: (0,) * len(shape))

    out_padded = pl.pallas_call(
        _make_kernel(bf16_matmul),
        out_shape=jax.ShapeDtypeStruct((b, fmax), jnp.float32),
        in_specs=[full_spec(a) for a in args],
        out_specs=pl.BlockSpec((b, fmax), lambda: (0, 0)),
        cost_estimate=cost,
    )(*args)

    return out_padded[:, :out_dim]


def init_params(key, input_size, h1, h2, h3, output_size):
    """Deterministic init mimicking nn.Linear default (U[-1/sqrt(fan_in), +])."""
    params = {}
    dims = [(input_size, h1), (h1, h2), (h2, h3), (h3, output_size)]
    for i, (fin, fout) in enumerate(dims, start=1):
        key, kw, kb = jax.random.split(key, 3)
        bound = 1.0 / jnp.sqrt(jnp.float32(fin))
        # stored already transposed: (in_features, out_features)
        params[f"w{i}"] = jax.random.uniform(kw, (fin, fout), jnp.float32, -bound, bound)
        params[f"b{i}"] = jax.random.uniform(kb, (1, fout), jnp.float32, -bound, bound)
    for i, h in enumerate([h1, h2, h3], start=1):
        params[f"g{i}"] = jnp.ones((1, h), jnp.float32)    # BatchNorm weight
        params[f"be{i}"] = jnp.zeros((1, h), jnp.float32)  # BatchNorm bias
    return params


def reference_forward(x, params):
    """Pure-JAX reference with the exact PyTorch training-mode semantics."""
    h = x
    for i in range(1, 4):
        h = h @ params[f"w{i}"] + params[f"b{i}"]
        mu = jnp.mean(h, axis=0, keepdims=True)
        var = jnp.mean((h - mu) ** 2, axis=0, keepdims=True)  # biased var
        h = (h - mu) / jnp.sqrt(var + EPS) * params[f"g{i}"] + params[f"be{i}"]
        h = jnp.maximum(h, 0.0)
    return h @ params["w4"] + params["b4"]


if __name__ == "__main__":
    # Small shapes implied by the module: (batch, input_size) fully-connected net.
    B, IN, H1, H2, H3, OUT = 8, 32, 64, 64, 32, 16

    key = jax.random.PRNGKey(0)
    key, kx = jax.random.split(key)
    x = jax.random.normal(kx, (B, IN), jnp.float32)

    params = init_params(key, IN, H1, H2, H3, OUT)
    ref = reference_forward(x, params)

    # --- f32 path (default): params prepared ONCE, off the per-call path. ---
    prep = prepare_params(params)
    out = jax.block_until_ready(
        ann_batch_3_forward(x, prep["w"], prep["vec"], out_dim=prep["out_dim"]))
    assert out.shape == (B, OUT)
    assert jnp.allclose(out, ref, atol=1e-4, rtol=1e-4), "f32 kernel mismatch vs reference"

    # --- bf16 path: weights pre-cast at prep time; gated to batch >= 16. ---
    B16 = 16
    x16 = jax.random.normal(jax.random.PRNGKey(1), (B16, IN), jnp.float32)
    ref16 = reference_forward(x16, params)
    prep16 = prepare_params(params, bf16_matmul=True)
    out16 = jax.block_until_ready(
        ann_batch_3_forward(x16, prep16["w"], prep16["vec"], out_dim=prep16["out_dim"]))
    assert out16.shape == (B16, OUT)
    assert jnp.allclose(out16, ref16, atol=1e-1, rtol=1e-1), "bf16 kernel mismatch vs reference"

    print("KERNEL_OK")
</pallas_src>

<mosaic_0001>
module attributes {stable_mosaic.version = 11 : i64} {
  func.func @kernel(%arg0: memref<8x128xf32, #tpu.memory_space<vmem>>, %arg1: memref<4x128x128xf32, #tpu.memory_space<vmem>>, %arg2: memref<8x128xf32, #tpu.memory_space<vmem>>, %arg3: memref<8x128xf32, #tpu.memory_space<vmem>>) attributes {dimension_semantics = [], scalar_prefetch = 0 : i64, scratch_operands = 0 : i64, tpu.core_type = #tpu.core_type<tc>} {
    %c0 = arith.constant 0 : index
    %c0_0 = arith.constant 0 : index
    %0 = vector.load %arg0[%c0, %c0_0] : memref<8x128xf32, #tpu.memory_space<vmem>>, vector<8x128xf32>
    %c0_1 = arith.constant 0 : index
    %c0_2 = arith.constant 0 : index
    %c0_3 = arith.constant 0 : index
    %1 = vector.load %arg1[%c0_1, %c0_2, %c0_3] : memref<4x128x128xf32, #tpu.memory_space<vmem>>, vector<1x128x128xf32>
    %2 = vector.shape_cast %1 : vector<1x128x128xf32> to vector<128x128xf32>
    %cst = arith.constant dense<0.000000e+00> : vector<8x128xf32>
    %3 = tpu.matmul %0, %2, %cst {dimension_numbers = #tpu.dot_dimension_numbers<[1], [0], [0], [1], [0, 0, 1, 1], [], []>} : vector<8x128xf32>, vector<128x128xf32>, vector<8x128xf32> -> vector<8x128xf32>
    %cst_4 = arith.constant dense<0.000000e+00> : vector<128xf32>
    %4 = vector.multi_reduction <add>, %3, %cst_4 [0] : vector<8x128xf32> to vector<128xf32>
    %5 = vector.shape_cast %4 : vector<128xf32> to vector<1x128xf32>
    %cst_5 = arith.constant 1.250000e-01 : f32
    %6 = vector.broadcast %cst_5 : f32 to vector<1x128xf32>
    %7 = arith.mulf %5, %6 : vector<1x128xf32>
    %8 = arith.mulf %3, %3 : vector<8x128xf32>
    %cst_6 = arith.constant dense<0.000000e+00> : vector<128xf32>
    %9 = vector.multi_reduction <add>, %8, %cst_6 [0] : vector<8x128xf32> to vector<128xf32>
    %10 = vector.shape_cast %9 : vector<128xf32> to vector<1x128xf32>
    %cst_7 = arith.constant 1.250000e-01 : f32
    %11 = vector.broadcast %cst_7 : f32 to vector<1x128xf32>
    %12 = arith.mulf %10, %11 : vector<1x128xf32>
    %13 = arith.mulf %7, %7 : vector<1x128xf32>
    %14 = arith.subf %12, %13 : vector<1x128xf32>
    %cst_8 = arith.constant 0.000000e+00 : f32
    %15 = vector.broadcast %cst_8 : f32 to vector<1x128xf32>
    %16 = arith.maximumf %14, %15 : vector<1x128xf32>
    %cst_9 = arith.constant 9.99999974E-6 : f32
    %17 = vector.broadcast %cst_9 : f32 to vector<1x128xf32>
    %18 = arith.addf %16, %17 : vector<1x128xf32>
    %19 = math.rsqrt %18 : vector<1x128xf32>
    %c0_10 = arith.constant 0 : index
    %c0_11 = arith.constant 0 : index
    %20 = vector.load %arg2[%c0_10, %c0_11] : memref<8x128xf32, #tpu.memory_space<vmem>>, vector<1x128xf32>
    %21 = arith.mulf %19, %20 : vector<1x128xf32>
    %c1 = arith.constant 1 : index
    %c0_12 = arith.constant 0 : index
    %22 = vector.load %arg2[%c1, %c0_12] : memref<8x128xf32, #tpu.memory_space<vmem>>, vector<1x128xf32>
    %23 = arith.mulf %7, %21 : vector<1x128xf32>
    %24 = arith.subf %22, %23 : vector<1x128xf32>
    %25 = vector.broadcast %21 : vector<1x128xf32> to vector<8x128xf32>
    %26 = arith.mulf %3, %25 : vector<8x128xf32>
    %27 = vector.broadcast %24 : vector<1x128xf32> to vector<8x128xf32>
    %28 = arith.addf %26, %27 : vector<8x128xf32>
    %cst_13 = arith.constant 0.000000e+00 : f32
    %29 = vector.broadcast %cst_13 : f32 to vector<8x128xf32>
    %30 = arith.maximumf %28, %29 : vector<8x128xf32>
    %c1_14 = arith.constant 1 : index
    %c0_15 = arith.constant 0 : index
    %c0_16 = arith.constant 0 : index
    %31 = vector.load %arg1[%c1_14, %c0_15, %c0_16] : memref<4x128x128xf32, #tpu.memory_space<vmem>>, vector<1x128x128xf32>
    %32 = vector.shape_cast %31 : vector<1x128x128xf32> to vector<128x128xf32>
    %cst_17 = arith.constant dense<0.000000e+00> : vector<8x128xf32>
    %33 = tpu.matmul %30, %32, %cst_17 {dimension_numbers = #tpu.dot_dimension_numbers<[1], [0], [0], [1], [0, 0, 1, 1], [], []>} : vector<8x128xf32>, vector<128x128xf32>, vector<8x128xf32> -> vector<8x128xf32>
    %cst_18 = arith.constant dense<0.000000e+00> : vector<128xf32>
    %34 = vector.multi_reduction <add>, %33, %cst_18 [0] : vector<8x128xf32> to vector<128xf32>
    %35 = vector.shape_cast %34 : vector<128xf32> to vector<1x128xf32>
    %cst_19 = arith.constant 1.250000e-01 : f32
    %36 = vector.broadcast %cst_19 : f32 to vector<1x128xf32>
    %37 = arith.mulf %35, %36 : vector<1x128xf32>
    %38 = arith.mulf %33, %33 : vector<8x128xf32>
    %cst_20 = arith.constant dense<0.000000e+00> : vector<128xf32>
    %39 = vector.multi_reduction <add>, %38, %cst_20 [0] : vector<8x128xf32> to vector<128xf32>
    %40 = vector.shape_cast %39 : vector<128xf32> to vector<1x128xf32>
    %cst_21 = arith.constant 1.250000e-01 : f32
    %41 = vector.broadcast %cst_21 : f32 to vector<1x128xf32>
    %42 = arith.mulf %40, %41 : vector<1x128xf32>
    %43 = arith.mulf %37, %37 : vector<1x128xf32>
    %44 = arith.subf %42, %43 : vector<1x128xf32>
    %cst_22 = arith.constant 0.000000e+00 : f32
    %45 = vector.broadcast %cst_22 : f32 to vector<1x128xf32>
    %46 = arith.maximumf %44, %45 : vector<1x128xf32>
    %cst_23 = arith.constant 9.99999974E-6 : f32
    %47 = vector.broadcast %cst_23 : f32 to vector<1x128xf32>
    %48 = arith.addf %46, %47 : vector<1x128xf32>
    %49 = math.rsqrt %48 : vector<1x128xf32>
    %c2 = arith.constant 2 : index
    %c0_24 = arith.constant 0 : index
    %50 = vector.load %arg2[%c2, %c0_24] : memref<8x128xf32, #tpu.memory_space<vmem>>, vector<1x128xf32>
    %51 = arith.mulf %49, %50 : vector<1x128xf32>
    %c3 = arith.constant 3 : index
    %c0_25 = arith.constant 0 : index
    %52 = vector.load %arg2[%c3, %c0_25] : memref<8x128xf32, #tpu.memory_space<vmem>>, vector<1x128xf32>
    %53 = arith.mulf %37, %51 : vector<1x128xf32>
    %54 = arith.subf %52, %53 : vector<1x128xf32>
    %55 = vector.broadcast %51 : vector<1x128xf32> to vector<8x128xf32>
    %56 = arith.mulf %33, %55 : vector<8x128xf32>
    %57 = vector.broadcast %54 : vector<1x128xf32> to vector<8x128xf32>
    %58 = arith.addf %56, %57 : vector<8x128xf32>
    %cst_26 = arith.constant 0.000000e+00 : f32
    %59 = vector.broadcast %cst_26 : f32 to vector<8x128xf32>
    %60 = arith.maximumf %58, %59 : vector<8x128xf32>
    %c2_27 = arith.constant 2 : index
    %c0_28 = arith.constant 0 : index
    %c0_29 = arith.constant 0 : index
    %61 = vector.load %arg1[%c2_27, %c0_28, %c0_29] : memref<4x128x128xf32, #tpu.memory_space<vmem>>, vector<1x128x128xf32>
    %62 = vector.shape_cast %61 : vector<1x128x128xf32> to vector<128x128xf32>
    %cst_30 = arith.constant dense<0.000000e+00> : vector<8x128xf32>
    %63 = tpu.matmul %60, %62, %cst_30 {dimension_numbers = #tpu.dot_dimension_numbers<[1], [0], [0], [1], [0, 0, 1, 1], [], []>} : vector<8x128xf32>, vector<128x128xf32>, vector<8x128xf32> -> vector<8x128xf32>
    %cst_31 = arith.constant dense<0.000000e+00> : vector<128xf32>
    %64 = vector.multi_reduction <add>, %63, %cst_31 [0] : vector<8x128xf32> to vector<128xf32>
    %65 = vector.shape_cast %64 : vector<128xf32> to vector<1x128xf32>
    %cst_32 = arith.constant 1.250000e-01 : f32
    %66 = vector.broadcast %cst_32 : f32 to vector<1x128xf32>
    %67 = arith.mulf %65, %66 : vector<1x128xf32>
    %68 = arith.mulf %63, %63 : vector<8x128xf32>
    %cst_33 = arith.constant dense<0.000000e+00> : vector<128xf32>
    %69 = vector.multi_reduction <add>, %68, %cst_33 [0] : vector<8x128xf32> to vector<128xf32>
    %70 = vector.shape_cast %69 : vector<128xf32> to vector<1x128xf32>
    %cst_34 = arith.constant 1.250000e-01 : f32
    %71 = vector.broadcast %cst_34 : f32 to vector<1x128xf32>
    %72 = arith.mulf %70, %71 : vector<1x128xf32>
    %73 = arith.mulf %67, %67 : vector<1x128xf32>
    %74 = arith.subf %72, %73 : vector<1x128xf32>
    %cst_35 = arith.constant 0.000000e+00 : f32
    %75 = vector.broadcast %cst_35 : f32 to vector<1x128xf32>
    %76 = arith.maximumf %74, %75 : vector<1x128xf32>
    %cst_36 = arith.constant 9.99999974E-6 : f32
    %77 = vector.broadcast %cst_36 : f32 to vector<1x128xf32>
    %78 = arith.addf %76, %77 : vector<1x128xf32>
    %79 = math.rsqrt %78 : vector<1x128xf32>
    %c4 = arith.constant 4 : index
    %c0_37 = arith.constant 0 : index
    %80 = vector.load %arg2[%c4, %c0_37] : memref<8x128xf32, #tpu.memory_space<vmem>>, vector<1x128xf32>
    %81 = arith.mulf %79, %80 : vector<1x128xf32>
    %c5 = arith.constant 5 : index
    %c0_38 = arith.constant 0 : index
    %82 = vector.load %arg2[%c5, %c0_38] : memref<8x128xf32, #tpu.memory_space<vmem>>, vector<1x128xf32>
    %83 = arith.mulf %67, %81 : vector<1x128xf32>
    %84 = arith.subf %82, %83 : vector<1x128xf32>
    %85 = vector.broadcast %81 : vector<1x128xf32> to vector<8x128xf32>
    %86 = arith.mulf %63, %85 : vector<8x128xf32>
    %87 = vector.broadcast %84 : vector<1x128xf32> to vector<8x128xf32>
    %88 = arith.addf %86, %87 : vector<8x128xf32>
    %cst_39 = arith.constant 0.000000e+00 : f32
    %89 = vector.broadcast %cst_39 : f32 to vector<8x128xf32>
    %90 = arith.maximumf %88, %89 : vector<8x128xf32>
    %c3_40 = arith.constant 3 : index
    %c0_41 = arith.constant 0 : index
    %c0_42 = arith.constant 0 : index
    %91 = vector.load %arg1[%c3_40, %c0_41, %c0_42] : memref<4x128x128xf32, #tpu.memory_space<vmem>>, vector<1x128x128xf32>
    %92 = vector.shape_cast %91 : vector<1x128x128xf32> to vector<128x128xf32>
    %cst_43 = arith.constant dense<0.000000e+00> : vector<8x128xf32>
    %93 = tpu.matmul %90, %92, %cst_43 {dimension_numbers = #tpu.dot_dimension_numbers<[1], [0], [0], [1], [0, 0, 1, 1], [], []>} : vector<8x128xf32>, vector<128x128xf32>, vector<8x128xf32> -> vector<8x128xf32>
    %c6 = arith.constant 6 : index
    %c0_44 = arith.constant 0 : index
    %94 = vector.load %arg2[%c6, %c0_44] : memref<8x128xf32, #tpu.memory_space<vmem>>, vector<1x128xf32>
    %95 = vector.broadcast %94 : vector<1x128xf32> to vector<8x128xf32>
    %96 = arith.addf %93, %95 : vector<8x128xf32>
    %c0_45 = arith.constant 0 : index
    %c0_46 = arith.constant 0 : index
    %97 = vector.load %arg3[%c0_45, %c0_46] : memref<8x128xf32, #tpu.memory_space<vmem>>, vector<8x128xf32>
    tpu.vector_store %arg3[%c0_45, %c0_46], %96 {strides = array<i32>} : memref<8x128xf32, #tpu.memory_space<vmem>>, vector<8x128xf32>,
    return
  }
}

</mosaic_0001>

<llo_original>
// kernel: ann_batch_3_forward.1
$region0: #{ann_batch_3_forward.1}
  #allocation0 [shape = 'u32[]', space=smem, size = 0x4, offset = 0x4, fixed_abs, tag = 'smem constant byte address 0x4 - core index']
  #allocation1 [shape = 'u32[144,128]{1,0:T(1,128)}', space=vmem, size = 0x12000, scoped, tag = 'internal scratch']
  %s0 = inlined_call_operand.vmem [shape: f32[8,128], index: 0, kind: input, shape index: {}]
  %s1 = inlined_call_operand.hbm [shape: f32[4,128,128], index: 1, kind: input, shape index: {}]
  %s2 = inlined_call_operand.vmem [shape: f32[8,128], index: 2, kind: input, shape index: {}]
  %s3 = inlined_call_operand.hbm [shape: f32[8,128], index: 3, kind: output, shape index: {}]
  %s4 = sld [smem:[#allocation0]]
  $region26: #{ann_batch_3_forward.1} parent=0
    _
  %s6 = ssub.s32 1, %s4
  %s7 = scalar_select 0, %s6, %s4
  $region1: #{ann_batch_3_forward.1} parent=0
    #allocation2 [shape = 'u8[262144]{0}', space=vmem, size = 0x40000, scoped, tag = 'input window, operand 1, single buffered']
    #allocation3 [shape = 's32[1]{0}', space=sflag, size = 0x4, scoped, tag = 'scoped memory for ann_batch_3_forward.1']
    #allocation4 [shape = 's32[1]{0}', space=sflag, size = 0x4, scoped, tag = 'scoped memory for ann_batch_3_forward.1']
    #allocation5 [shape = 'u8[4096]{0}', space=vmem, size = 0x1000, scoped, tag = 'output window, operand 0, single buffered']
    %8 = vsyncpa [#allocation3], 0
    %9 = vsyncpa [#allocation4], 0
    // Predicated region
    $region2: #{ann_batch_3_forward.1} parent=1 // pred_check
      _
    $region3: #{ann_batch_3_forward.1} parent=1 // pred_check_branch
      %11 = sbr.rel (0) target = $region5
    $region4: #{ann_batch_3_forward.1} parent=1 // pred_region
      _
    $region5: #{ann_batch_3_forward.1} parent=1 // pred_fallthru
      _
    // Predicated region
    $region6: #{ann_batch_3_forward.1} parent=1 // pred_check
      _
    $region7: #{ann_batch_3_forward.1} parent=1 // pred_check_branch
      %13 = sbr.rel (0) target = $region9
    $region8: #{ann_batch_3_forward.1} parent=1 // pred_region
      %s15 = ssub.s32 8192, 8192
      %16 = vsyncadd [#allocation3], %s15
      %s17 = sshll.u32 [#allocation2], 4
      %s18 = int_to_ptr.vmem [resolvable:$true] %s17
      %23 = dma.hbm_to_vmem [thread:$0]  %s1, 8192, %s18, [#allocation3], 128, 128, 8
    $region9: #{ann_batch_3_forward.1} parent=1 // pred_fallthru
      _
    // Predicated region
    $region10: #{ann_batch_3_forward.1} parent=1 // pred_check
      _
    $region11: #{ann_batch_3_forward.1} parent=1 // pred_check_branch
      %25 = sbr.rel (0) target = $region13
    $region12: #{ann_batch_3_forward.1} parent=1 // pred_region
      _
    $region13: #{ann_batch_3_forward.1} parent=1 // pred_fallthru
      _
    // Predicated region
    $region14: #{ann_batch_3_forward.1} parent=1 // pred_check
      _
    $region15: #{ann_batch_3_forward.1} parent=1 // pred_check_branch
      %27 = sbr.rel (0) target = $region17
    $region16: #{ann_batch_3_forward.1} parent=1 // pred_region
      %28 = dma.done [#allocation3], 8192
    $region17: #{ann_batch_3_forward.1} parent=1 // pred_fallthru
      _
    %v29 = vld [vmem:[%s0] sm:$0xff]
    %v30 = vld [vmem:[#allocation2] sm:$0xff]
    %v31 = vld [vmem:[#allocation2 + $0x8] sm:$0xff]
    %v32 = vld [vmem:[#allocation2 + $0x10] sm:$0xff]
    %v33 = vld [vmem:[#allocation2 + $0x18] sm:$0xff]
    %v34 = vld [vmem:[#allocation2 + $0x20] sm:$0xff]
    %v35 = vld [vmem:[#allocation2 + $0x28] sm:$0xff]
    %v36 = vld [vmem:[#allocation2 + $0x30] sm:$0xff]
    %v37 = vld [vmem:[#allocation2 + $0x38] sm:$0xff]
    %v38 = vld [vmem:[#allocation2 + $0x40] sm:$0xff]
    %v39 = vld [vmem:[#allocation2 + $0x48] sm:$0xff]
    %v40 = vld [vmem:[#allocation2 + $0x50] sm:$0xff]
    %v41 = vld [vmem:[#allocation2 + $0x58] sm:$0xff]
    %v42 = vld [vmem:[#allocation2 + $0x60] sm:$0xff]
    %v43 = vld [vmem:[#allocation2 + $0x68] sm:$0xff]
    %v44 = vld [vmem:[#allocation2 + $0x70] sm:$0xff]
    %v45 = vld [vmem:[#allocation2 + $0x78] sm:$0xff]
    %46 = vmatprep.subr.mxu0 0.0
    %47 = vmatpush1.msra.mxu0 %v30
    %48 = vmatprep.subr.mxu0 0.0
    %49 = vmatpush1.msra.mxu0 %v31
    %50 = vmatprep.subr.mxu0 0.0
    %51 = vmatpush1.msra.mxu0 %v32
    %52 = vmatprep.subr.mxu0 0.0
    %53 = vmatpush1.msra.mxu0 %v33
    %54 = vmatprep.subr.mxu0 0.0
    %55 = vmatpush1.msra.mxu0 %v34
    %56 = vmatprep.subr.mxu0 0.0
    %57 = vmatpush1.msra.mxu0 %v35
    %58 = vmatprep.subr.mxu0 0.0
    %59 = vmatpush1.msra.mxu0 %v36
    %60 = vmatprep.subr.mxu0 0.0
    %61 = vmatpush1.msra.mxu0 %v37
    %62 = vmatprep.subr.mxu0 0.0
    %63 = vmatpush1.msra.mxu0 %v38
    %64 = vmatprep.subr.mxu0 0.0
    %65 = vmatpush1.msra.mxu0 %v39
    %66 = vmatprep.subr.mxu0 0.0
    %67 = vmatpush1.msra.mxu0 %v40
    %68 = vmatprep.subr.mxu0 0.0
    %69 = vmatpush1.msra.mxu0 %v41
    %70 = vmatprep.subr.mxu0 0.0
    %71 = vmatpush1.msra.mxu0 %v42
    %72 = vmatprep.subr.mxu0 0.0
    %73 = vmatpush1.msra.mxu0 %v43
    %74 = vmatprep.subr.mxu0 0.0
    %75 = vmatpush1.msra.mxu0 %v44
    %76 = vmatprep.subr.mxu0 0.0
    %77 = vmatpush1.msra.mxu0 %v45
    %78 = vmatprep.subr.mxu0 0.0
    %79 = vmatpush1.msra.mxu0 0.0
    %80 = vmatprep.subr.mxu0 0.0
    %81 = vmatpush1.msra.mxu0 0.0
    %82 = vmatprep.subr.mxu0 0.0
    %83 = vmatpush1.msra.mxu0 0.0
    %84 = vmatprep.subr.mxu0 0.0
    %85 = vmatpush1.msra.mxu0 0.0
    %86 = vmatprep.subr.mxu0 0.0
    %87 = vmatpush1.msra.mxu0 0.0
    %88 = vmatprep.subr.mxu0 0.0
    %89 = vmatpush1.msra.mxu0 0.0
    %90 = vmatprep.subr.mxu0 0.0
    %91 = vmatpush1.msra.mxu0 0.0
    %92 = vmatprep.subr.mxu0 0.0
    %93 = vmatpush1.msra.mxu0 0.0
    %94 = vmatprep.subr.mxu0 0.0
    %95 = vmatpush1.msra.mxu0 0.0
    %96 = vmatprep.subr.mxu0 0.0
    %97 = vmatpush1.msra.mxu0 0.0
    %98 = vmatprep.subr.mxu0 0.0
    %99 = vmatpush1.msra.mxu0 0.0
    %100 = vmatprep.subr.mxu0 0.0
    %101 = vmatpush1.msra.mxu0 0.0
    %102 = vmatprep.subr.mxu0 0.0
    %103 = vmatpush1.msra.mxu0 0.0
    %104 = vmatprep.subr.mxu0 0.0
    %105 = vmatpush1.msra.mxu0 0.0
    %106 = vmatprep.subr.mxu0 0.0
    %107 = vmatpush1.msra.mxu0 0.0
    %108 = vmatprep.subr.mxu0 0.0
    %109 = vmatpush1.msra.mxu0 0.0
    %110 = vmatprep.mubr.f32.mxu0 0.0
    %111 = vmatmul.mubr.f32.gmra.mrb[0].mxu0 %v29
    %v112 = vpop.f32.mrb[0].mxu0
    %v113 = vadd.f32 0.0, %v112
    %v114 = vpop.f32.mrb[0].mxu0
    %115 = vdwg.mxu0
    %v116 = vrot.slane %v113, 4
    %v117 = vadd.f32 %v113, %v116
    %v118 = vrot.slane %v117, 2
    %v119 = vadd.f32 %v117, %v118
    %v120 = vrot.slane %v119, 1
    %v121 = vadd.f32 %v119, %v120
    %v122 = vmul.f32 %v121, 0.125
    %v123 = vmul.f32 %v113, %v113
    %v124 = vrot.slane %v123, 4
    %v125 = vadd.f32 %v123, %v124
    %v126 = vrot.slane %v125, 2
    %v127 = vadd.f32 %v125, %v126
    %v128 = vrot.slane %v127, 1
    %v129 = vadd.f32 %v127, %v128
    %v130 = vmul.f32 %v129, 0.125
    %v131 = vmul.f32 %v122, %v122
    %v132 = vsub.f32 %v130, %v131
    %v133 = vmax.f32 %v132, 0.0
    %v134 = vadd.f32 %v133, 1e-05
    %v135 = vrsqrt.pop %v134
    %v136 = vld [vmem:[%s2] sm:$0x1]
    %v137 = vmul.f32 %v135, %v136
    %v138 = vld [vmem:[%s2 + $0x1] sm:$0x1]
    %v139 = vmul.f32 %v122, %v137
    %v140 = vsub.f32 %v138, %v139
    %v141 = vlaneseq
    %v142 = vshrl.u32 %v141, 7
    %v143 = vsub.s32 0, %v142
    %v144 = vrot.slane %v137, %v143
    %v145 = vmul.f32 %v113, %v144
    %v146 = vlaneseq
    %v147 = vshrl.u32 %v146, 7
    %v148 = vsub.s32 0, %v147
    %v149 = vrot.slane %v140, %v148
    %v150 = vadd.f32 %v145, %v149
    %v151 = vmax.f32 %v150, 0.0
    %s152 = scalar_lea.vmem [#allocation2], 128
    %v153 = vld [vmem:[%s152] sm:$0xff]
    %v154 = vld [vmem:[%s152 + $0x8] sm:$0xff]
    %v155 = vld [vmem:[%s152 + $0x10] sm:$0xff]
    %v156 = vld [vmem:[%s152 + $0x18] sm:$0xff]
    %v157 = vld [vmem:[%s152 + $0x20] sm:$0xff]
    %v158 = vld [vmem:[%s152 + $0x28] sm:$0xff]
    %v159 = vld [vmem:[%s152 + $0x30] sm:$0xff]
    %v160 = vld [vmem:[%s152 + $0x38] sm:$0xff]
    %v161 = vld [vmem:[%s152 + $0x40] sm:$0xff]
    %v162 = vld [vmem:[%s152 + $0x48] sm:$0xff]
    %v163 = vld [vmem:[%s152 + $0x50] sm:$0xff]
    %v164 = vld [vmem:[%s152 + $0x58] sm:$0xff]
    %v165 = vld [vmem:[%s152 + $0x60] sm:$0xff]
    %v166 = vld [vmem:[%s152 + $0x68] sm:$0xff]
    %v167 = vld [vmem:[%s152 + $0x70] sm:$0xff]
    %v168 = vld [vmem:[%s152 + $0x78] sm:$0xff]
    %169 = vmatprep.subr.mxu0 0.0
    %170 = vmatpush1.msra.mxu0 %v153
    %171 = vmatprep.subr.mxu0 0.0
    %172 = vmatpush1.msra.mxu0 %v154
    %173 = vmatprep.subr.mxu0 0.0
    %174 = vmatpush1.msra.mxu0 %v155
    %175 = vmatprep.subr.mxu0 0.0
    %176 = vmatpush1.msra.mxu0 %v156
    %177 = vmatprep.subr.mxu0 0.0
    %178 = vmatpush1.msra.mxu0 %v157
    %179 = vmatprep.subr.mxu0 0.0
    %180 = vmatpush1.msra.mxu0 %v158
    %181 = vmatprep.subr.mxu0 0.0
    %182 = vmatpush1.msra.mxu0 %v159
    %183 = vmatprep.subr.mxu0 0.0
    %184 = vmatpush1.msra.mxu0 %v160
    %185 = vmatprep.subr.mxu0 0.0
    %186 = vmatpush1.msra.mxu0 %v161
    %187 = vmatprep.subr.mxu0 0.0
    %188 = vmatpush1.msra.mxu0 %v162
    %189 = vmatprep.subr.mxu0 0.0
    %190 = vmatpush1.msra.mxu0 %v163
    %191 = vmatprep.subr.mxu0 0.0
    %192 = vmatpush1.msra.mxu0 %v164
    %193 = vmatprep.subr.mxu0 0.0
    %194 = vmatpush1.msra.mxu0 %v165
    %195 = vmatprep.subr.mxu0 0.0
    %196 = vmatpush1.msra.mxu0 %v166
    %197 = vmatprep.subr.mxu0 0.0
    %198 = vmatpush1.msra.mxu0 %v167
    %199 = vmatprep.subr.mxu0 0.0
    %200 = vmatpush1.msra.mxu0 %v168
    %201 = vmatprep.subr.mxu0 0.0
    %202 = vmatpush1.msra.mxu0 0.0
    %203 = vmatprep.subr.mxu0 0.0
    %204 = vmatpush1.msra.mxu0 0.0
    %205 = vmatprep.subr.mxu0 0.0
    %206 = vmatpush1.msra.mxu0 0.0
    %207 = vmatprep.subr.mxu0 0.0
    %208 = vmatpush1.msra.mxu0 0.0
    %209 = vmatprep.subr.mxu0 0.0
    %210 = vmatpush1.msra.mxu0 0.0
    %211 = vmatprep.subr.mxu0 0.0
    %212 = vmatpush1.msra.mxu0 0.0
    %213 = vmatprep.subr.mxu0 0.0
    %214 = vmatpush1.msra.mxu0 0.0
    %215 = vmatprep.subr.mxu0 0.0
    %216 = vmatpush1.msra.mxu0 0.0
    %217 = vmatprep.subr.mxu0 0.0
    %218 = vmatpush1.msra.mxu0 0.0
    %219 = vmatprep.subr.mxu0 0.0
    %220 = vmatpush1.msra.mxu0 0.0
    %221 = vmatprep.subr.mxu0 0.0
    %222 = vmatpush1.msra.mxu0 0.0
    %223 = vmatprep.subr.mxu0 0.0
    %224 = vmatpush1.msra.mxu0 0.0
    %225 = vmatprep.subr.mxu0 0.0
    %226 = vmatpush1.msra.mxu0 0.0
    %227 = vmatprep.subr.mxu0 0.0
    %228 = vmatpush1.msra.mxu0 0.0
    %229 = vmatprep.subr.mxu0 0.0
    %230 = vmatpush1.msra.mxu0 0.0
    %231 = vmatprep.subr.mxu0 0.0
    %232 = vmatpush1.msra.mxu0 0.0
    %233 = vmatprep.mubr.f32.mxu0 0.0
    %234 = vmatmul.mubr.f32.gmra.mrb[0].mxu0 %v151
    %v235 = vpop.f32.mrb[0].mxu0
    %v236 = vadd.f32 0.0, %v235
    %v237 = vpop.f32.mrb[0].mxu0
    %238 = vdwg.mxu0
    %v239 = vrot.slane %v236, 4
    %v240 = vadd.f32 %v236, %v239
    %v241 = vrot.slane %v240, 2
    %v242 = vadd.f32 %v240, %v241
    %v243 = vrot.slane %v242, 1
    %v244 = vadd.f32 %v242, %v243
    %v245 = vmul.f32 %v244, 0.125
    %v246 = vmul.f32 %v236, %v236
    %v247 = vrot.slane %v246, 4
    %v248 = vadd.f32 %v246, %v247
    %v249 = vrot.slane %v248, 2
    %v250 = vadd.f32 %v248, %v249
    %v251 = vrot.slane %v250, 1
    %v252 = vadd.f32 %v250, %v251
    %v253 = vmul.f32 %v252, 0.125
    %v254 = vmul.f32 %v245, %v245
    %v255 = vsub.f32 %v253, %v254
    %v256 = vmax.f32 %v255, 0.0
    %v257 = vadd.f32 %v256, 1e-05
    %v258 = vrsqrt.pop %v257
    %v259 = vld [vmem:[%s2 + $0x2] sm:$0x1]
    %v260 = vmul.f32 %v258, %v259
    %v261 = vld [vmem:[%s2 + $0x3] sm:$0x1]
    %v262 = vmul.f32 %v245, %v260
    %v263 = vsub.f32 %v261, %v262
    %v264 = vlaneseq
    %v265 = vshrl.u32 %v264, 7
    %v266 = vsub.s32 0, %v265
    %v267 = vrot.slane %v260, %v266
    %v268 = vmul.f32 %v236, %v267
    %v269 = vlaneseq
    %v270 = vshrl.u32 %v269, 7
    %v271 = vsub.s32 0, %v270
    %v272 = vrot.slane %v263, %v271
    %v273 = vadd.f32 %v268, %v272
    %v274 = vmax.f32 %v273, 0.0
    %s275 = scalar_lea.vmem [#allocation2], 256
    %v276 = vld [vmem:[%s275] sm:$0xff]
    %v277 = vld [vmem:[%s275 + $0x8] sm:$0xff]
    %v278 = vld [vmem:[%s275 + $0x10] sm:$0xff]
    %v279 = vld [vmem:[%s275 + $0x18] sm:$0xff]
    %v280 = vld [vmem:[%s275 + $0x20] sm:$0xff]
    %v281 = vld [vmem:[%s275 + $0x28] sm:$0xff]
    %v282 = vld [vmem:[%s275 + $0x30] sm:$0xff]
    %v283 = vld [vmem:[%s275 + $0x38] sm:$0xff]
    %v284 = vld [vmem:[%s275 + $0x40] sm:$0xff]
    %v285 = vld [vmem:[%s275 + $0x48] sm:$0xff]
    %v286 = vld [vmem:[%s275 + $0x50] sm:$0xff]
    %v287 = vld [vmem:[%s275 + $0x58] sm:$0xff]
    %v288 = vld [vmem:[%s275 + $0x60] sm:$0xff]
    %v289 = vld [vmem:[%s275 + $0x68] sm:$0xff]
    %v290 = vld [vmem:[%s275 + $0x70] sm:$0xff]
    %v291 = vld [vmem:[%s275 + $0x78] sm:$0xff]
    %292 = vmatprep.subr.mxu0 0.0
    %293 = vmatpush1.msra.mxu0 %v276
    %294 = vmatprep.subr.mxu0 0.0
    %295 = vmatpush1.msra.mxu0 %v277
    %296 = vmatprep.subr.mxu0 0.0
    %297 = vmatpush1.msra.mxu0 %v278
    %298 = vmatprep.subr.mxu0 0.0
    %299 = vmatpush1.msra.mxu0 %v279
    %300 = vmatprep.subr.mxu0 0.0
    %301 = vmatpush1.msra.mxu0 %v280
    %302 = vmatprep.subr.mxu0 0.0
    %303 = vmatpush1.msra.mxu0 %v281
    %304 = vmatprep.subr.mxu0 0.0
    %305 = vmatpush1.msra.mxu0 %v282
    %306 = vmatprep.subr.mxu0 0.0
    %307 = vmatpush1.msra.mxu0 %v283
    %308 = vmatprep.subr.mxu0 0.0
    %309 = vmatpush1.msra.mxu0 %v284
    %310 = vmatprep.subr.mxu0 0.0
    %311 = vmatpush1.msra.mxu0 %v285
    %312 = vmatprep.subr.mxu0 0.0
    %313 = vmatpush1.msra.mxu0 %v286
    %314 = vmatprep.subr.mxu0 0.0
    %315 = vmatpush1.msra.mxu0 %v287
    %316 = vmatprep.subr.mxu0 0.0
    %317 = vmatpush1.msra.mxu0 %v288
    %318 = vmatprep.subr.mxu0 0.0
    %319 = vmatpush1.msra.mxu0 %v289
    %320 = vmatprep.subr.mxu0 0.0
    %321 = vmatpush1.msra.mxu0 %v290
    %322 = vmatprep.subr.mxu0 0.0
    %323 = vmatpush1.msra.mxu0 %v291
    %324 = vmatprep.subr.mxu0 0.0
    %325 = vmatpush1.msra.mxu0 0.0
    %326 = vmatprep.subr.mxu0 0.0
    %327 = vmatpush1.msra.mxu0 0.0
    %328 = vmatprep.subr.mxu0 0.0
    %329 = vmatpush1.msra.mxu0 0.0
    %330 = vmatprep.subr.mxu0 0.0
    %331 = vmatpush1.msra.mxu0 0.0
    %332 = vmatprep.subr.mxu0 0.0
    %333 = vmatpush1.msra.mxu0 0.0
    %334 = vmatprep.subr.mxu0 0.0
    %335 = vmatpush1.msra.mxu0 0.0
    %336 = vmatprep.subr.mxu0 0.0
    %337 = vmatpush1.msra.mxu0 0.0
    %338 = vmatprep.subr.mxu0 0.0
    %339 = vmatpush1.msra.mxu0 0.0
    %340 = vmatprep.subr.mxu0 0.0
    %341 = vmatpush1.msra.mxu0 0.0
    %342 = vmatprep.subr.mxu0 0.0
    %343 = vmatpush1.msra.mxu0 0.0
    %344 = vmatprep.subr.mxu0 0.0
    %345 = vmatpush1.msra.mxu0 0.0
    %346 = vmatprep.subr.mxu0 0.0
    %347 = vmatpush1.msra.mxu0 0.0
    %348 = vmatprep.subr.mxu0 0.0
    %349 = vmatpush1.msra.mxu0 0.0
    %350 = vmatprep.subr.mxu0 0.0
    %351 = vmatpush1.msra.mxu0 0.0
    %352 = vmatprep.subr.mxu0 0.0
    %353 = vmatpush1.msra.mxu0 0.0
    %354 = vmatprep.subr.mxu0 0.0
    %355 = vmatpush1.msra.mxu0 0.0
    %356 = vmatprep.mubr.f32.mxu0 0.0
    %357 = vmatmul.mubr.f32.gmra.mrb[0].mxu0 %v274
    %v358 = vpop.f32.mrb[0].mxu0
    %v359 = vadd.f32 0.0, %v358
    %v360 = vpop.f32.mrb[0].mxu0
    %361 = vdwg.mxu0
    %v362 = vrot.slane %v359, 4
    %v363 = vadd.f32 %v359, %v362
    %v364 = vrot.slane %v363, 2
    %v365 = vadd.f32 %v363, %v364
    %v366 = vrot.slane %v365, 1
    %v367 = vadd.f32 %v365, %v366
    %v368 = vmul.f32 %v367, 0.125
    %v369 = vmul.f32 %v359, %v359
    %v370 = vrot.slane %v369, 4
    %v371 = vadd.f32 %v369, %v370
    %v372 = vrot.slane %v371, 2
    %v373 = vadd.f32 %v371, %v372
    %v374 = vrot.slane %v373, 1
    %v375 = vadd.f32 %v373, %v374
    %v376 = vmul.f32 %v375, 0.125
    %v377 = vmul.f32 %v368, %v368
    %v378 = vsub.f32 %v376, %v377
    %v379 = vmax.f32 %v378, 0.0
    %v380 = vadd.f32 %v379, 1e-05
    %v381 = vrsqrt.pop %v380
    %v382 = vld [vmem:[%s2 + $0x4] sm:$0x1]
    %v383 = vmul.f32 %v381, %v382
    %v384 = vld [vmem:[%s2 + $0x5] sm:$0x1]
    %v385 = vmul.f32 %v368, %v383
    %v386 = vsub.f32 %v384, %v385
    %v387 = vlaneseq
    %v388 = vshrl.u32 %v387, 7
    %v389 = vsub.s32 0, %v388
    %v390 = vrot.slane %v383, %v389
    %v391 = vmul.f32 %v359, %v390
    %v392 = vlaneseq
    %v393 = vshrl.u32 %v392, 7
    %v394 = vsub.s32 0, %v393
    %v395 = vrot.slane %v386, %v394
    %v396 = vadd.f32 %v391, %v395
    %v397 = vmax.f32 %v396, 0.0
    %s398 = scalar_lea.vmem [#allocation2], 384
    %v399 = vld [vmem:[%s398] sm:$0xff]
    %v400 = vld [vmem:[%s398 + $0x8] sm:$0xff]
    %v401 = vld [vmem:[%s398 + $0x10] sm:$0xff]
    %v402 = vld [vmem:[%s398 + $0x18] sm:$0xff]
    %v403 = vld [vmem:[%s398 + $0x20] sm:$0xff]
    %v404 = vld [vmem:[%s398 + $0x28] sm:$0xff]
    %v405 = vld [vmem:[%s398 + $0x30] sm:$0xff]
    %v406 = vld [vmem:[%s398 + $0x38] sm:$0xff]
    %v407 = vld [vmem:[%s398 + $0x40] sm:$0xff]
    %v408 = vld [vmem:[%s398 + $0x48] sm:$0xff]
    %v409 = vld [vmem:[%s398 + $0x50] sm:$0xff]
    %v410 = vld [vmem:[%s398 + $0x58] sm:$0xff]
    %v411 = vld [vmem:[%s398 + $0x60] sm:$0xff]
    %v412 = vld [vmem:[%s398 + $0x68] sm:$0xff]
    %v413 = vld [vmem:[%s398 + $0x70] sm:$0xff]
    %v414 = vld [vmem:[%s398 + $0x78] sm:$0xff]
    %v415 = vld [vmem:[%s2 + $0x6] sm:$0x1]
    %v416 = vlaneseq
    %v417 = vshrl.u32 %v416, 7
    %v418 = vsub.s32 0, %v417
    %v419 = vrot.slane %v415, %v418
    %420 = vmatprep.subr.mxu0 0.0
    %421 = vmatpush1.msra.mxu0 %v399
    %422 = vmatprep.subr.mxu0 0.0
    %423 = vmatpush1.msra.mxu0 %v400
    %424 = vmatprep.subr.mxu0 0.0
    %425 = vmatpush1.msra.mxu0 %v401
    %426 = vmatprep.subr.mxu0 0.0
    %427 = vmatpush1.msra.mxu0 %v402
    %428 = vmatprep.subr.mxu0 0.0
    %429 = vmatpush1.msra.mxu0 %v403
    %430 = vmatprep.subr.mxu0 0.0
    %431 = vmatpush1.msra.mxu0 %v404
    %432 = vmatprep.subr.mxu0 0.0
    %433 = vmatpush1.msra.mxu0 %v405
    %434 = vmatprep.subr.mxu0 0.0
    %435 = vmatpush1.msra.mxu0 %v406
    %436 = vmatprep.subr.mxu0 0.0
    %437 = vmatpush1.msra.mxu0 %v407
    %438 = vmatprep.subr.mxu0 0.0
    %439 = vmatpush1.msra.mxu0 %v408
    %440 = vmatprep.subr.mxu0 0.0
    %441 = vmatpush1.msra.mxu0 %v409
    %442 = vmatprep.subr.mxu0 0.0
    %443 = vmatpush1.msra.mxu0 %v410
    %444 = vmatprep.subr.mxu0 0.0
    %445 = vmatpush1.msra.mxu0 %v411
    %446 = vmatprep.subr.mxu0 0.0
    %447 = vmatpush1.msra.mxu0 %v412
    %448 = vmatprep.subr.mxu0 0.0
    %449 = vmatpush1.msra.mxu0 %v413
    %450 = vmatprep.subr.mxu0 0.0
    %451 = vmatpush1.msra.mxu0 %v414
    %452 = vmatprep.subr.mxu0 0.0
    %453 = vmatpush1.msra.mxu0 0.0
    %454 = vmatprep.subr.mxu0 0.0
    %455 = vmatpush1.msra.mxu0 0.0
    %456 = vmatprep.subr.mxu0 0.0
    %457 = vmatpush1.msra.mxu0 0.0
    %458 = vmatprep.subr.mxu0 0.0
    %459 = vmatpush1.msra.mxu0 0.0
    %460 = vmatprep.subr.mxu0 0.0
    %461 = vmatpush1.msra.mxu0 0.0
    %462 = vmatprep.subr.mxu0 0.0
    %463 = vmatpush1.msra.mxu0 0.0
    %464 = vmatprep.subr.mxu0 0.0
    %465 = vmatpush1.msra.mxu0 0.0
    %466 = vmatprep.subr.mxu0 0.0
    %467 = vmatpush1.msra.mxu0 0.0
    %468 = vmatprep.subr.mxu0 0.0
    %469 = vmatpush1.msra.mxu0 0.0
    %470 = vmatprep.subr.mxu0 0.0
    %471 = vmatpush1.msra.mxu0 0.0
    %472 = vmatprep.subr.mxu0 0.0
    %473 = vmatpush1.msra.mxu0 0.0
    %474 = vmatprep.subr.mxu0 0.0
    %475 = vmatpush1.msra.mxu0 0.0
    %476 = vmatprep.subr.mxu0 0.0
    %477 = vmatpush1.msra.mxu0 0.0
    %478 = vmatprep.subr.mxu0 0.0
    %479 = vmatpush1.msra.mxu0 0.0
    %480 = vmatprep.subr.mxu0 0.0
    %481 = vmatpush1.msra.mxu0 0.0
    %482 = vmatprep.subr.mxu0 0.0
    %483 = vmatpush1.msra.mxu0 0.0
    %484 = vmatprep.mubr.f32.mxu0 0.0
    %485 = vmatmul.mubr.f32.gmra.mrb[0].mxu0 %v397
    %v486 = vpop.f32.mrb[0].mxu0
    %v487 = vadd.f32 %v419, %v486
    %v488 = vpop.f32.mrb[0].mxu0
    %489 = vdwg.mxu0
    %490 = vst [vmem:[#allocation5] sm:$0xff] %v487
    // Predicated region
    $region18: #{ann_batch_3_forward.1} parent=1 // pred_check
      _
    $region19: #{ann_batch_3_forward.1} parent=1 // pred_check_branch
      %492 = sbr.rel (0) target = $region21
    $region20: #{ann_batch_3_forward.1} parent=1 // pred_region
      %s494 = ssub.s32 128, 128
      %495 = vsyncadd [#allocation4], %s494
      %s497 = sshll.u32 [#allocation5], 4
      %s498 = int_to_ptr.vmem [resolvable:$true] %s497
      %500 = dma.vmem_to_hbm [thread:$0]  %s498, 128, %s3, [#allocation4]
    $region21: #{ann_batch_3_forward.1} parent=1 // pred_fallthru
      _
    // Predicated region
    $region22: #{ann_batch_3_forward.1} parent=1 // pred_check
      _
    $region23: #{ann_batch_3_forward.1} parent=1 // pred_check_branch
      %502 = sbr.rel (0) target = $region25
    $region24: #{ann_batch_3_forward.1} parent=1 // pred_region
      %503 = dma.done [#allocation4], 128
    $region25: #{ann_batch_3_forward.1} parent=1 // pred_fallthru
      _
    %504 = vsyncpa [#allocation3], 1
    %505 = vsyncpa [#allocation4], 1

</llo_original>
